<compile_context>
chip_gen: v6e
topology: v6e:2x2x1
jax: 0.10.0
libtpu: 0.0.40
codegen_flags: <defaults>
</compile_context>

<pallas_src>
import functools

import jax
import jax.numpy as jnp
from jax.experimental import pallas as pl
from jax.experimental.pallas import tpu as pltpu


# ---------------------------------------------------------------------------
# Pallas kernels
# ---------------------------------------------------------------------------
def _feature_transform_kernel(wt_ref, xt_ref, b_ref, o_ref, *, apply_relu):
    # [f_out, f_in] @ [f_in, tile_n] -> [f_out, tile_n]  (MXU, f32 accumulation)
    out = jnp.dot(wt_ref[...], xt_ref[...], preferred_element_type=jnp.float32)
    out = out + b_ref[...]
    if apply_relu:
        out = jnp.maximum(out, 0.0)
    o_ref[...] = out.astype(o_ref.dtype)


def feature_transform_t(xT, wT, b, *, apply_relu, out_dtype, tile_n):
    """out^T = W^T @ x^T (+ bias, ReLU), lane-dense over the node axis."""
    f_out, f_in = wT.shape
    f_in2, n = xT.shape
    assert f_in2 == f_in and n % tile_n == 0
    b_col = (jnp.zeros((f_out, 1), jnp.float32) if b is None
             else b.reshape(f_out, 1).astype(jnp.float32))
    return pl.pallas_call(
        functools.partial(_feature_transform_kernel, apply_relu=apply_relu),
        out_shape=jax.ShapeDtypeStruct((f_out, n), out_dtype),
        grid=(n // tile_n,),
        in_specs=[
            pl.BlockSpec((f_out, f_in), lambda i: (0, 0)),   # full W^T (tiny)
            pl.BlockSpec((f_in, tile_n), lambda i: (0, i)),  # node tile of x^T
            pl.BlockSpec((f_out, 1), lambda i: (0, 0)),      # bias column
        ],
        out_specs=pl.BlockSpec((f_out, tile_n), lambda i: (0, i)),
        compiler_params=pltpu.CompilerParams(dimension_semantics=("parallel",)),
    )(wT, xT, b_col)


def _aggregate_kernel(featT_ref, at_ref, b_ref, o_ref, acc_ref, *, apply_relu):
    k = pl.program_id(1)

    @pl.when(k == 0)
    def _init():
        acc_ref[...] = jnp.zeros_like(acc_ref)

    # featT is VMEM-resident (constant index_map); grab the K-slab by first-axis
    # dynamic index: [f, tile_k] @ [tile_k, tile_m] -> [f, tile_m], dest tile on lanes.
    acc_ref[...] += jnp.dot(featT_ref[k], at_ref[...],
                            preferred_element_type=jnp.float32)

    @pl.when(k == pl.num_programs(1) - 1)
    def _finalize():
        out = acc_ref[...] + b_ref[...]     # bias + ReLU in f32 on the accumulator
        if apply_relu:
            out = jnp.maximum(out, 0.0)
        o_ref[...] = out.astype(o_ref.dtype)


def aggregate_t(aT, featT_blocked, b, *, apply_relu, out_dtype, tile_m, tile_k):
    """out^T = feat^T @ a_norm^T (+ bias, ReLU), K-tiled over source nodes.

    featT_blocked: (kb, f, tile_k) -- the whole feature slab stays VMEM-resident
    (index_map constant), only a^T blocks are streamed from HBM.
    """
    kb, f, tk = featT_blocked.shape
    n = aT.shape[0]
    assert tk == tile_k and aT.shape == (n, n)
    assert n % tile_m == 0 and n == kb * tile_k
    b_col = (jnp.zeros((f, 1), jnp.float32) if b is None
             else b.reshape(f, 1).astype(jnp.float32))
    # Note: with tile_m = tile_k = 512 (bf16) the streamed a^T block is ~0.5 MB
    # (1 MB double-buffered) and the resident feat slab is f*N*2 bytes -- well
    # within the default scoped VMEM on v5e/v6e/v7x for N up to ~16k.
    return pl.pallas_call(
        functools.partial(_aggregate_kernel, apply_relu=apply_relu),
        out_shape=jax.ShapeDtypeStruct((f, n), out_dtype),
        grid=(n // tile_m, kb),               # reduction (source-node) axis last
        in_specs=[
            pl.BlockSpec((kb, f, tile_k), lambda i, k: (0, 0, 0)),  # resident feat
            pl.BlockSpec((tile_k, tile_m), lambda i, k: (k, i)),    # streamed a^T
            pl.BlockSpec((f, 1), lambda i, k: (0, 0)),              # bias column
        ],
        out_specs=pl.BlockSpec((f, tile_m), lambda i, k: (0, i)),
        scratch_shapes=[pltpu.VMEM((f, tile_m), jnp.float32)],
        compiler_params=pltpu.CompilerParams(
            dimension_semantics=("parallel", "arbitrary")),
    )(featT_blocked, aT, b_col)


def _decode_kernel(zs_ref, zd_ref, o_ref):
    # out[e] = sum_d z_src[d, e] * z_dst[d, e]  -> lane-dense (1, tile_e) store
    o_ref[...] = jnp.sum(zs_ref[...] * zd_ref[...], axis=0, keepdims=True)


def decode_t(zsT, zdT, *, tile_e):
    d, e = zsT.shape
    assert e % tile_e == 0
    out = pl.pallas_call(
        _decode_kernel,
        out_shape=jax.ShapeDtypeStruct((1, e), jnp.float32),
        grid=(e // tile_e,),
        in_specs=[
            pl.BlockSpec((d, tile_e), lambda i: (0, i)),
            pl.BlockSpec((d, tile_e), lambda i: (0, i)),
        ],
        out_specs=pl.BlockSpec((1, tile_e), lambda i: (0, i)),
        compiler_params=pltpu.CompilerParams(dimension_semantics=("parallel",)),
    )(zsT, zdT)
    return out[0]


# ---------------------------------------------------------------------------
# Glue: GCN symmetric normalization, built directly in transposed layout
# ---------------------------------------------------------------------------
def build_gcn_norm_adj_t(edge_index, num_nodes, padded_nodes, dtype):
    """a_norm^T = (D^{-1/2} (A + I) D^{-1/2})^T built directly (no transpose pass).

    Padded nodes (index >= num_nodes) get degree 0 -> zero rows/cols, so they do
    not perturb real-node results.
    """
    src = edge_index[0]
    dst = edge_index[1]
    loops = jnp.arange(num_nodes, dtype=edge_index.dtype)
    src = jnp.concatenate([src, loops])
    dst = jnp.concatenate([dst, loops])
    ones = jnp.ones(src.shape[0], jnp.float32)
    deg = jnp.zeros((padded_nodes,), jnp.float32).at[dst].add(ones)
    dinv = jnp.where(deg > 0, jax.lax.rsqrt(deg), 0.0)
    w = (dinv[src] * dinv[dst]).astype(dtype)
    # a_norm[dst, src] = w  =>  a_norm^T[src, dst] = w
    return jnp.zeros((padded_nodes, padded_nodes), dtype).at[src, dst].add(w)


# ---------------------------------------------------------------------------
# Tiling / padding helpers
# ---------------------------------------------------------------------------
def _round_up(x, m):
    return ((x + m - 1) // m) * m


def _node_tiling(n):
    """Pick (padded N, dest-node tile, source-node K tile).

    Targets: ~512-wide tiles for big graphs (long DMA segments, few grid steps),
    a single K step for small graphs, and >= 2 dest tiles whenever possible so
    the "parallel" axis can shard across v7x's two TensorCores.
    """
    if n <= 256:
        n_pad = _round_up(n, 128)
        tile_m = 128 if n_pad >= 256 else n_pad
        tile_k = n_pad
    elif n <= 1024:
        n_pad = _round_up(n, 256)
        tile_m = n_pad // 2
        tile_k = n_pad
    else:
        n_pad = _round_up(n, 512)
        tile_m = 512
        tile_k = 512
    return n_pad, tile_m, tile_k


def _feat_tile(n_pad):
    if n_pad <= 2048:
        return n_pad
    return 1024 if n_pad % 1024 == 0 else 512


def _edge_tiling(e):
    if e <= 2048:
        e_pad = _round_up(e, 128)
        return e_pad, e_pad
    e_pad = _round_up(e, 1024)
    return e_pad, 1024


def _block_k(featT, tile_k):
    """(f, n) -> (n // tile_k, f, tile_k) so the aggregation can index K-slabs."""
    f, n = featT.shape
    assert n % tile_k == 0
    kb = n // tile_k
    return featT.reshape(f, kb, tile_k).transpose(1, 0, 2)


# ---------------------------------------------------------------------------
# Model wrapper (forward == encode + decode)
# ---------------------------------------------------------------------------
def init_params(key, in_dim, hidden_dim, out_dim):
    k1, k2 = jax.random.split(key)

    def glorot(k, fan_in, fan_out):
        limit = jnp.sqrt(6.0 / (fan_in + fan_out))
        return jax.random.uniform(k, (fan_in, fan_out), jnp.float32, -limit, limit)

    return {
        "w1": glorot(k1, in_dim, hidden_dim),
        "b1": jnp.zeros((hidden_dim,), jnp.float32),
        "w2": glorot(k2, hidden_dim, out_dim),
        "b2": jnp.zeros((out_dim,), jnp.float32),
    }


def gcn_layer_t(aT, xT, w, b, *, apply_relu, matmul_dtype, out_dtype,
                tile_m, tile_k, tile_n):
    f_in, f_out = w.shape
    wT = w.T.astype(matmul_dtype)
    if f_in < f_out:
        # (A X) W == A (X W): aggregate in the narrower f_in basis first.
        axT = aggregate_t(aT, _block_k(xT, tile_k), None, apply_relu=False,
                          out_dtype=matmul_dtype, tile_m=tile_m, tile_k=tile_k)
        return feature_transform_t(axT, wT, b, apply_relu=apply_relu,
                                   out_dtype=out_dtype, tile_n=tile_n)
    xwT = feature_transform_t(xT, wT, None, apply_relu=False,
                              out_dtype=matmul_dtype, tile_n=tile_n)
    return aggregate_t(aT, _block_k(xwT, tile_k), b, apply_relu=apply_relu,
                       out_dtype=out_dtype, tile_m=tile_m, tile_k=tile_k)


def gcn_link_pred_forward(params, x, edge_index, edge_label_index, *,
                          matmul_dtype=jnp.bfloat16):
    n, f_in = x.shape
    n_pad, tile_m, tile_k = _node_tiling(n)
    tile_n = _feat_tile(n_pad)

    # a^T built directly in the matmul dtype (no N x N transpose / convert pass).
    aT = build_gcn_norm_adj_t(edge_index, n, n_pad, matmul_dtype)
    xT = jnp.zeros((f_in, n_pad), matmul_dtype).at[:, :n].set(
        x.T.astype(matmul_dtype))

    # Layer 1 emits bf16 directly (out_dtype=matmul_dtype) -> feeds layer 2.
    hT = gcn_layer_t(aT, xT, params["w1"], params["b1"], apply_relu=True,
                     matmul_dtype=matmul_dtype, out_dtype=matmul_dtype,
                     tile_m=tile_m, tile_k=tile_k, tile_n=tile_n)
    zT = gcn_layer_t(aT, hT, params["w2"], params["b2"], apply_relu=False,
                     matmul_dtype=matmul_dtype, out_dtype=jnp.float32,
                     tile_m=tile_m, tile_k=tile_k, tile_n=tile_n)

    e = edge_label_index.shape[1]
    e_pad, tile_e = _edge_tiling(e)
    src = jnp.zeros((e_pad,), edge_label_index.dtype).at[:e].set(edge_label_index[0])
    dst = jnp.zeros((e_pad,), edge_label_index.dtype).at[:e].set(edge_label_index[1])
    zsT = zT[:, src]    # data-dependent column gather stays in XLA glue
    zdT = zT[:, dst]
    return decode_t(zsT, zdT, tile_e=tile_e)[:e]


# ---------------------------------------------------------------------------
# Reference in plain JAX.  With matmul_dtype=float32 this is the exact module
# semantics; with bfloat16 it mirrors the kernel's input-quantization points
# (including the (AX)W vs A(XW) composition order) so the bf16 path can be
# checked tightly.
# ---------------------------------------------------------------------------
def reference_forward(params, x, edge_index, edge_label_index,
                      matmul_dtype=jnp.float32):
    hp = jax.lax.Precision.HIGHEST
    q = lambda v: v.astype(matmul_dtype).astype(jnp.float32)
    n = x.shape[0]
    a = build_gcn_norm_adj_t(edge_index, n, n, matmul_dtype).T.astype(jnp.float32)

    def layer(h_in_q, w, b, relu):
        f_in, f_out = w.shape
        if f_in < f_out:                      # aggregate first (narrower basis)
            agg = q(jnp.dot(a, h_in_q, precision=hp))
            out = jnp.dot(agg, q(w), precision=hp) + b
        else:                                 # transform first
            hw = q(jnp.dot(h_in_q, q(w), precision=hp))
            out = jnp.dot(a, hw, precision=hp) + b
        return jnp.maximum(out, 0.0) if relu else out

    h = q(layer(q(x), params["w1"], params["b1"], True))
    z = layer(h, params["w2"], params["b2"], False)
    src, dst = edge_label_index[0], edge_label_index[1]
    return jnp.sum(z[src] * z[dst], axis=-1)


if __name__ == "__main__":
    key = jax.random.PRNGKey(0)
    k_x, k_e, k_el, k_p = jax.random.split(key, 4)

    N, IN_DIM, HIDDEN_DIM, OUT_DIM = 256, 16, 32, 16
    NUM_EDGES, NUM_LABEL_EDGES = 512, 256

    x = jax.random.normal(k_x, (N, IN_DIM), jnp.float32)
    edge_index = jax.random.randint(k_e, (2, NUM_EDGES), 0, N, jnp.int32)
    edge_label_index = jax.random.randint(k_el, (2, NUM_LABEL_EDGES), 0, N, jnp.int32)

    params = init_params(k_p, IN_DIM, HIDDEN_DIM, OUT_DIM)

    # Tight check: pure-f32 kernel path vs. the f32 module reference.
    out_f32 = jax.block_until_ready(
        gcn_link_pred_forward(params, x, edge_index, edge_label_index,
                              matmul_dtype=jnp.float32))
    ref_f32 = reference_forward(params, x, edge_index, edge_label_index,
                                matmul_dtype=jnp.float32)
    assert out_f32.shape == (NUM_LABEL_EDGES,)
    assert jnp.allclose(out_f32, ref_f32, atol=1e-3, rtol=1e-3), "f32 mismatch"

    # Production path: bf16 matmul inputs, f32 accumulation; checked against the
    # precision-mirrored reference (same bf16 quantization points).
    out_bf16 = jax.block_until_ready(
        gcn_link_pred_forward(params, x, edge_index, edge_label_index,
                              matmul_dtype=jnp.bfloat16))
    ref_bf16 = reference_forward(params, x, edge_index, edge_label_index,
                                 matmul_dtype=jnp.bfloat16)
    assert out_bf16.shape == (NUM_LABEL_EDGES,)
    assert jnp.allclose(out_bf16, ref_bf16, atol=1e-2, rtol=1e-2), "bf16 mismatch"

    print("KERNEL_OK")
</pallas_src>

<mosaic_0001>
module attributes {stable_mosaic.version = 11 : i64} {
  func.func @_aggregate_kernel(%arg0: i32, %arg1: i32, %arg2: memref<1x16x256xf32, #tpu.memory_space<vmem>>, %arg3: memref<256x128xf32, #tpu.memory_space<vmem>>, %arg4: memref<16x1xf32, #tpu.memory_space<vmem>>, %arg5: memref<16x128xf32, #tpu.memory_space<vmem>>, %arg6: memref<16x128xf32, #tpu.memory_space<vmem>>) attributes {dimension_semantics = [#tpu.dimension_semantics<parallel>, #tpu.dimension_semantics<arbitrary>], iteration_bounds = array<i64: 2, 1>, scalar_prefetch = 0 : i64, scratch_operands = 1 : i64, tpu.core_type = #tpu.core_type<tc>, window_params = [{pipeline_mode = #tpu.pipeline_mode<synchronous>, transform_indices = @transform_0, window_bounds = array<i64: 1, 16, 256>}, {transform_indices = @transform_1, window_bounds = array<i64: 256, 128>}, {pipeline_mode = #tpu.pipeline_mode<synchronous>, transform_indices = @transform_2, window_bounds = array<i64: 16, 1>}, {transform_indices = @transform_3, window_bounds = array<i64: 16, 128>}]} {
    %c0_i32 = arith.constant 0 : i32
    %0 = arith.cmpi eq, %arg1, %c0_i32 : i32
    %1 = arith.extui %0 : i1 to i32
    %c0_i32_0 = arith.constant 0 : i32
    %2 = arith.cmpi ne, %1, %c0_i32_0 : i32
    scf.if %2 {
      %cst_10 = arith.constant 0.000000e+00 : f32
      %14 = vector.broadcast %cst_10 : f32 to vector<16x128xf32>
      %c0_11 = arith.constant 0 : index
      %c0_12 = arith.constant 0 : index
      %15 = vector.load %arg6[%c0_11, %c0_12] : memref<16x128xf32, #tpu.memory_space<vmem>>, vector<16x128xf32>
      tpu.vector_store %arg6[%c0_11, %c0_12], %14 {strides = array<i32>} : memref<16x128xf32, #tpu.memory_space<vmem>>, vector<16x128xf32>,
    } else {
    }
    %c0 = arith.constant 0 : index
    %c0_1 = arith.constant 0 : index
    %3 = vector.load %arg6[%c0, %c0_1] : memref<16x128xf32, #tpu.memory_space<vmem>>, vector<16x128xf32>
    %4 = arith.index_cast %arg1 : i32 to index
    %c0_2 = arith.constant 0 : index
    %c0_3 = arith.constant 0 : index
    %5 = vector.load %arg2[%4, %c0_2, %c0_3] : memref<1x16x256xf32, #tpu.memory_space<vmem>>, vector<1x16x256xf32>
    %6 = vector.shape_cast %5 : vector<1x16x256xf32> to vector<16x256xf32>
    %c0_4 = arith.constant 0 : index
    %c0_5 = arith.constant 0 : index
    %7 = vector.load %arg3[%c0_4, %c0_5] : memref<256x128xf32, #tpu.memory_space<vmem>>, vector<256x128xf32>
    %cst = arith.constant dense<0.000000e+00> : vector<16x128xf32>
    %8 = tpu.matmul %6, %7, %cst {dimension_numbers = #tpu.dot_dimension_numbers<[1], [0], [0], [1], [0, 0, 1, 1], [], []>} : vector<16x256xf32>, vector<256x128xf32>, vector<16x128xf32> -> vector<16x128xf32>
    %9 = arith.addf %3, %8 : vector<16x128xf32>
    %c0_6 = arith.constant 0 : index
    %c0_7 = arith.constant 0 : index
    %10 = vector.load %arg6[%c0_6, %c0_7] : memref<16x128xf32, #tpu.memory_space<vmem>>, vector<16x128xf32>
    tpu.vector_store %arg6[%c0_6, %c0_7], %9 {strides = array<i32>} : memref<16x128xf32, #tpu.memory_space<vmem>>, vector<16x128xf32>,
    %c0_i32_8 = arith.constant 0 : i32
    %11 = arith.cmpi eq, %arg1, %c0_i32_8 : i32
    %12 = arith.extui %11 : i1 to i32
    %c0_i32_9 = arith.constant 0 : i32
    %13 = arith.cmpi ne, %12, %c0_i32_9 : i32
    scf.if %13 {
      %c0_10 = arith.constant 0 : index
      %c0_11 = arith.constant 0 : index
      %14 = vector.load %arg6[%c0_10, %c0_11] : memref<16x128xf32, #tpu.memory_space<vmem>>, vector<16x128xf32>
      %c0_12 = arith.constant 0 : index
      %c0_13 = arith.constant 0 : index
      %15 = vector.load %arg4[%c0_12, %c0_13] : memref<16x1xf32, #tpu.memory_space<vmem>>, vector<16x1xf32>
      %16 = vector.broadcast %15 : vector<16x1xf32> to vector<16x128xf32>
      %17 = arith.addf %14, %16 : vector<16x128xf32>
      %c0_14 = arith.constant 0 : index
      %c0_15 = arith.constant 0 : index
      %18 = vector.load %arg5[%c0_14, %c0_15] : memref<16x128xf32, #tpu.memory_space<vmem>>, vector<16x128xf32>
      tpu.vector_store %arg5[%c0_14, %c0_15], %17 {strides = array<i32>} : memref<16x128xf32, #tpu.memory_space<vmem>>, vector<16x128xf32>,
    } else {
    }
    return
  }
  func.func @transform_0(%arg0: i32, %arg1: i32) -> (i32, i32, i32) {
    %c0_i32 = arith.constant 0 : i32
    %c0_i32_0 = arith.constant 0 : i32
    %c0_i32_1 = arith.constant 0 : i32
    %c0_i32_2 = arith.constant 0 : i32
    return %c0_i32, %c0_i32_0, %c0_i32_1 : i32, i32, i32
  }
  func.func @transform_1(%arg0: i32, %arg1: i32) -> (i32, i32) {
    %c0_i32 = arith.constant 0 : i32
    return %arg1, %arg0 : i32, i32
  }
  func.func @transform_2(%arg0: i32, %arg1: i32) -> (i32, i32) {
    %c0_i32 = arith.constant 0 : i32
    %c0_i32_0 = arith.constant 0 : i32
    %c0_i32_1 = arith.constant 0 : i32
    return %c0_i32, %c0_i32_0 : i32, i32
  }
  func.func @transform_3(%arg0: i32, %arg1: i32) -> (i32, i32) {
    %c0_i32 = arith.constant 0 : i32
    %c0_i32_0 = arith.constant 0 : i32
    return %c0_i32, %arg0 : i32, i32
  }
}

</mosaic_0001>

<llo_original>
// kernel: tpu_custom_call.1
$region0: #{tpu_custom_call.1}
  #allocation0 [shape = 'u32[]', space=smem, size = 0x4, offset = 0x4, fixed_abs, tag = 'smem constant byte address 0x4 - core index']
  #allocation1 [shape = 'u32[144,128]{1,0:T(1,128)}', space=vmem, size = 0x12000, scoped, tag = 'internal scratch']
  #allocation2 [shape = 'f32[16,128]{1,0:T(8,128)}', space=vmem, size = 0x2000, scoped, tag = 'scratch operand']
  %s0 = inlined_call_operand.hbm [shape: f32[1,16,256], index: 0, kind: input, shape index: {}]
  %s1 = inlined_call_operand.hbm [shape: f32[256,256], index: 1, kind: input, shape index: {}]
  %s2 = inlined_call_operand.vmem [shape: f32[16,1], index: 2, kind: input, shape index: {}]
  %s3 = inlined_call_operand.hbm [shape: f32[16,256], index: 3, kind: output, shape index: {}]
  %s4 = sld [smem:[#allocation0]]
  $region61: #{tpu_custom_call.1} parent=0
    _
  %s6 = ssub.s32 1, %s4
  %s7 = scalar_select 0, %s6, %s4
  $region1: #{tpu_custom_call.1} parent=0
    #allocation3 [shape = 'u8[16384]{0}', space=vmem, size = 0x4000, scoped, tag = 'input window, operand 0, single buffered']
    #allocation4 [shape = 's32[2]{0}', space=sflag, size = 0x8, scoped, tag = 'scoped memory for tpu_custom_call.1']
    #allocation5 [shape = 's32[2]{0}', space=sflag, size = 0x8, scoped, tag = 'scoped memory for tpu_custom_call.1']
    #allocation6 [shape = 'u8[262144]{0}', space=vmem, size = 0x40000, scoped, tag = 'input window, operand 1']
    #allocation7 [shape = 's32[2]{0}', space=sflag, size = 0x8, scoped, tag = 'scoped memory for tpu_custom_call.1']
    #allocation8 [shape = 'u8[16384]{0}', space=vmem, size = 0x4000, scoped, tag = 'output window, operand 0']
    %8 = vsyncpa [#allocation4], 0
    %9 = vsyncpa [#allocation7], 0
    %s10 = scalar_lea.sflag [#allocation7], 1
    %11 = vsyncpa %s10, 0
    %12 = vsyncpa [#allocation5], 0
    %s13 = scalar_lea.sflag [#allocation5], 1
    %14 = vsyncpa %s13, 0
    loop: start=0, step=1, limit=4
    $region2: #{tpu_custom_call.1} parent=1 // loop_pre_header
      _
    $region3: #{tpu_custom_call.1} parent=1 // loop_header
      %s16 = sphi 0, %s20
      %p17 = scmp.ge.s32.totalorder %s16, 4
      %s23 = sphi 0, %s35
      %s24 = sphi 0, %s31
      %s25 = sphi 0, %s23
      %s26 = sphi 0, %s24
      %s27 = sphi 0, %s25
      %s28 = sphi 0, %s26
      %s36 = sphi 0, %s36
      %s38 = sphi 0, %s36
      %s39 = sphi 0, %s38
      %s53 = sphi 0, %s39
      %s61 = sphi 0, %s63
      %s64 = sphi 0, %s61
      %s65 = sphi 0, %s64
      %s81 = sphi 0, %s65
      %s85 = sphi 0, %s85
      %s87 = sphi 0, %s85
      %s88 = sphi 0, %s87
      %s102 = sphi 0, %s88
      %s108 = sphi 0, %s110
      %s111 = sphi 0, %s108
      %s112 = sphi 0, %s111
      %s128 = sphi 0, %s112
    $region4: #{tpu_custom_call.1} parent=1 // loop_header_branch
      %19 = sbr.rel (%p17) target = $region8
    $region5: #{tpu_custom_call.1} parent=1 // loop_body
      %s21 = ssub.s32 %s16, 1
      %s22 = ssub.s32 %s16, 2
      %s29 = sadd.s32 1, %s24
      %p30 = scmp.ge.s32.totalorder %s29, 1
      %s31 = scalar_select %p30, 0, %s29
      %s32 = sadd.s32 1, %s23
      %s33 = scalar_select %p30, %s32, %s23
      %p34 = scmp.ge.s32.totalorder %s33, 2
      %s35 = scalar_select %p34, 0, %s33
      %s37 = sadd.s32 %s36, 1
      %p40 = scmp.eq.s32.totalorder %s16, 1
      %p41 = scmp.ne.s32.totalorder %s36, %s38
      %p42 = scmp.eq.s32.totalorder %s16, 0
      %p43 = por %p41, %p42
      %p44 = scmp.ne.s32.totalorder %s36, %s38
      %p45 = scmp.eq.s32.totalorder %s21, 1
      %p46 = por %p44, %p45
      %p47 = scmp.ne.s32.totalorder %s38, %s39
      %p48 = scmp.eq.s32.totalorder %s21, 0
      %p49 = por %p47, %p48
      %p50 = scmp.ne.s32.totalorder %s38, %s39
      %p51 = scmp.eq.s32.totalorder %s22, 1
      %p52 = por %p50, %p51
      %p54 = scmp.ne.s32.totalorder %s39, %s53
      %p55 = scmp.eq.s32.totalorder %s22, 0
      %p56 = por %p54, %p55
      %s57 = ssub.s32 %s24, %s31
      %s58 = ssub.s32 %s23, %s35
      %s59 = sor.u32 %s57, %s58
      %p60 = scmp.eq.s32.totalorder %s59, 0
      %s62 = sadd.s32 %s61, 1
      %s63 = scalar_select %p60, %s61, %s62
      %p66 = pneg %p60
      %p67 = scmp.eq.s32.totalorder %s16, 1
      %p68 = por %p66, %p67
      %p69 = scmp.ne.s32.totalorder %s61, %s64
      %p70 = scmp.eq.s32.totalorder %s16, 0
      %p71 = por %p69, %p70
      %p72 = scmp.ne.s32.totalorder %s61, %s64
      %p73 = scmp.eq.s32.totalorder %s21, 1
      %p74 = por %p72, %p73
      %p75 = scmp.ne.s32.totalorder %s64, %s65
      %p76 = scmp.eq.s32.totalorder %s21, 0
      %p77 = por %p75, %p76
      %p78 = scmp.ne.s32.totalorder %s64, %s65
      %p79 = scmp.eq.s32.totalorder %s22, 1
      %p80 = por %p78, %p79
      %p82 = scmp.ne.s32.totalorder %s65, %s81
      %p83 = scmp.eq.s32.totalorder %s22, 0
      %p84 = por %p82, %p83
      %s86 = sadd.s32 %s85, 1
      %p89 = scmp.eq.s32.totalorder %s16, 1
      %p90 = scmp.ne.s32.totalorder %s85, %s87
      %p91 = scmp.eq.s32.totalorder %s16, 0
      %p92 = por %p90, %p91
      %p93 = scmp.ne.s32.totalorder %s85, %s87
      %p94 = scmp.eq.s32.totalorder %s21, 1
      %p95 = por %p93, %p94
      %p96 = scmp.ne.s32.totalorder %s87, %s88
      %p97 = scmp.eq.s32.totalorder %s21, 0
      %p98 = por %p96, %p97
      %p99 = scmp.ne.s32.totalorder %s87, %s88
      %p100 = scmp.eq.s32.totalorder %s22, 1
      %p101 = por %p99, %p100
      %p103 = scmp.ne.s32.totalorder %s88, %s102
      %p104 = scmp.eq.s32.totalorder %s22, 0
      %p105 = por %p103, %p104
      %s106 = ssub.s32 %s23, %s35
      %p107 = scmp.eq.s32.totalorder %s106, 0
      %s109 = sadd.s32 %s108, 1
      %s110 = scalar_select %p107, %s108, %s109
      %p113 = pneg %p107
      %p114 = scmp.eq.s32.totalorder %s16, 1
      %p115 = por %p113, %p114
      %p116 = scmp.ne.s32.totalorder %s108, %s111
      %p117 = scmp.eq.s32.totalorder %s16, 0
      %p118 = por %p116, %p117
      %p119 = scmp.ne.s32.totalorder %s108, %s111
      %p120 = scmp.eq.s32.totalorder %s21, 1
      %p121 = por %p119, %p120
      %p122 = scmp.ne.s32.totalorder %s111, %s112
      %p123 = scmp.eq.s32.totalorder %s21, 0
      %p124 = por %p122, %p123
      %p125 = scmp.ne.s32.totalorder %s111, %s112
      %p126 = scmp.eq.s32.totalorder %s22, 1
      %p127 = por %p125, %p126
      %p129 = scmp.ne.s32.totalorder %s112, %s128
      %p130 = scmp.eq.s32.totalorder %s22, 0
      %p131 = por %p129, %p130
      %p132 = scmp.le.s32.totalorder 1, %s16
      %p133 = scmp.lt.s32.totalorder %s16, 3
      %p134 = pnand %p132, %p133
      %p135 = pneg %p134
      // Predicated region
      $region9: #{tpu_custom_call.1} parent=5 // pred_check
        _
      $region10: #{tpu_custom_call.1} parent=5 // pred_check_branch
        %137 = sbr.rel (%p134) target = $region12
      $region11: #{tpu_custom_call.1} parent=5 // pred_region
        %s138 = ssub.s32 %s16, 1
        // Predicated region
        $region13: #{tpu_custom_call.1} parent=11 // pred_check
          %p139 = pneg %p49
        $region14: #{tpu_custom_call.1} parent=11 // pred_check_branch
          %141 = sbr.rel (%p139) target = $region16
        $region15: #{tpu_custom_call.1} parent=11 // pred_region
          %s143 = ssub.s32 512, 512
          %144 = vsyncadd [#allocation4], %s143
          %s145 = sshll.u32 [#allocation3], 4
          %s146 = int_to_ptr.vmem [resolvable:$true] %s145
          %151 = dma.hbm_to_vmem [thread:$0]  %s0, 512, %s146, [#allocation4], 256, 256, 16
        $region16: #{tpu_custom_call.1} parent=11 // pred_fallthru
          _
        // Predicated region
        $region17: #{tpu_custom_call.1} parent=11 // pred_check
          %p152 = pneg %p98
        $region18: #{tpu_custom_call.1} parent=11 // pred_check_branch
          %154 = sbr.rel (%p152) target = $region20
        $region19: #{tpu_custom_call.1} parent=11 // pred_region
          _
        $region20: #{tpu_custom_call.1} parent=11 // pred_fallthru
          _
      $region12: #{tpu_custom_call.1} parent=5 // pred_fallthru
        _
      %p155 = scmp.lt.s32.totalorder %s16, 2
      // Predicated region
      $region21: #{tpu_custom_call.1} parent=5 // pred_check
        %p156 = pneg %p155
      $region22: #{tpu_custom_call.1} parent=5 // pred_check_branch
        %158 = sbr.rel (%p156) target = $region24
      $region23: #{tpu_custom_call.1} parent=5 // pred_region
        // Predicated region
        $region25: #{tpu_custom_call.1} parent=23 // pred_check
          %p159 = pneg %p71
        $region26: #{tpu_custom_call.1} parent=23 // pred_check_branch
          %161 = sbr.rel (%p159) target = $region28
        $region27: #{tpu_custom_call.1} parent=23 // pred_region
          %s162 = sand.u32 %s61, 1
          %s163 = scalar_lea.sflag [#allocation7], %s162
          %s164 = sand.u32 %s61, 1
          %s165 = smul.addr %s164, 256
          %s166 = scalar_lea.vmem [#allocation6], %s165
          %s167 = smul.u32 32, %s24
          %s169 = ssub.s32 4096, 4096
          %170 = vsyncadd %s163, %s169
          %s171 = smul.addr %s167, 2
          %s172 = sadd.s32 %s23, %s171
          %s173 = smul.addr %s172, 128
          %s174 = scalar_lea.hbm %s1, %s173
          %s175 = sshll.u32 %s166, 4
          %s176 = int_to_ptr.vmem [resolvable:$true] %s175
          %181 = dma.hbm_to_vmem [thread:$0]  %s174, 4096, %s176, %s163, 256, 128, 8
        $region28: #{tpu_custom_call.1} parent=23 // pred_fallthru
          _
      $region24: #{tpu_custom_call.1} parent=5 // pred_fallthru
        _
      %p182 = scmp.le.s32.totalorder 1, %s16
      %p183 = scmp.lt.s32.totalorder %s16, 3
      %p184 = pnand %p182, %p183
      %p185 = pneg %p184
      // Predicated region
      $region29: #{tpu_custom_call.1} parent=5 // pred_check
        _
      $region30: #{tpu_custom_call.1} parent=5 // pred_check_branch
        %187 = sbr.rel (%p184) target = $region32
      $region31: #{tpu_custom_call.1} parent=5 // pred_region
        %s188 = ssub.s32 %s16, 1
        // Predicated region
        $region33: #{tpu_custom_call.1} parent=31 // pred_check
          %p189 = pneg %p49
        $region34: #{tpu_custom_call.1} parent=31 // pred_check_branch
          %191 = sbr.rel (%p189) target = $region36
        $region35: #{tpu_custom_call.1} parent=31 // pred_region
          %192 = dma.done [#allocation4], 512
        $region36: #{tpu_custom_call.1} parent=31 // pred_fallthru
          _
        %s193 = sand.u32 %s64, 1
        %s194 = scalar_lea.sflag [#allocation7], %s193
        %s195 = sand.u32 %s64, 1
        %s196 = smul.addr %s195, 256
        %s197 = scalar_lea.vmem [#allocation6], %s196
        // Predicated region
        $region37: #{tpu_custom_call.1} parent=31 // pred_check
          %p198 = pneg %p77
        $region38: #{tpu_custom_call.1} parent=31 // pred_check_branch
          %200 = sbr.rel (%p198) target = $region40
        $region39: #{tpu_custom_call.1} parent=31 // pred_region
          %201 = dma.done %s194, 4096
        $region40: #{tpu_custom_call.1} parent=31 // pred_fallthru
          _
        %p202 = pneg %p49
        %p203 = pneg %p46
        %s204 = sand.u32 %s64, 1
        %s205 = scalar_lea.sflag [#allocation7], %s204
        %s206 = sand.u32 %s64, 1
        %s207 = smul.addr %s206, 256
        %s208 = scalar_lea.vmem [#allocation6], %s207
        %p209 = pneg %p77
        %p210 = pneg %p74
        %p211 = pneg %p98
        %p212 = pneg %p95
        %p213 = pneg %p124
        %p214 = pneg %p121
        %s215 = sand.u32 %s111, 1
        %s216 = scalar_lea.sflag [#allocation5], %s215
        %s217 = sand.u32 %s111, 1
        %s218 = smul.addr %s217, 16
        %s219 = scalar_lea.vmem [#allocation8], %s218
        %s220 = smul.u32 32, %s26
        %p221 = scmp.eq.s32.totalorder %s26, 0
        // Predicated region
        $region41: #{tpu_custom_call.1} parent=31 // pred_check
          %p222 = pneg %p221
        $region42: #{tpu_custom_call.1} parent=31 // pred_check_branch
          %224 = sbr.rel (%p222) target = $region44
        $region43: #{tpu_custom_call.1} parent=31 // pred_region
          %225 = vst [vmem:[#allocation2] sm:$0xff] 0.0
          %226 = vst [vmem:[#allocation2 + $0x8] sm:$0xff] 0.0
        $region44: #{tpu_custom_call.1} parent=31 // pred_fallthru
          _
        %v227 = vld [vmem:[#allocation2] sm:$0xff]
        %v228 = vld [vmem:[#allocation2 + $0x8] sm:$0xff]
        %s229 = smul.u32 %s26, 4
        %s230 = smul.addr %s229, 8
        %s231 = scalar_lea.vmem [#allocation3], %s230
        %v232 = vld [vmem:[%s231] sm:$0xff]
        %v233 = vld [vmem:[%s231 + $0x8] sm:$0xff]
        %v234 = vld [vmem:[%s231 + $0x10] sm:$0xff]
        %v235 = vld [vmem:[%s231 + $0x18] sm:$0xff]
        %v236 = vld [vmem:[%s197] sm:$0xff]
        %v237 = vld [vmem:[%s197 + $0x8] sm:$0xff]
        %v238 = vld [vmem:[%s197 + $0x10] sm:$0xff]
        %v239 = vld [vmem:[%s197 + $0x18] sm:$0xff]
        %v240 = vld [vmem:[%s197 + $0x20] sm:$0xff]
        %v241 = vld [vmem:[%s197 + $0x28] sm:$0xff]
        %v242 = vld [vmem:[%s197 + $0x30] sm:$0xff]
        %v243 = vld [vmem:[%s197 + $0x38] sm:$0xff]
        %v244 = vld [vmem:[%s197 + $0x40] sm:$0xff]
        %v245 = vld [vmem:[%s197 + $0x48] sm:$0xff]
        %v246 = vld [vmem:[%s197 + $0x50] sm:$0xff]
        %v247 = vld [vmem:[%s197 + $0x58] sm:$0xff]
        %v248 = vld [vmem:[%s197 + $0x60] sm:$0xff]
        %v249 = vld [vmem:[%s197 + $0x68] sm:$0xff]
        %v250 = vld [vmem:[%s197 + $0x70] sm:$0xff]
        %v251 = vld [vmem:[%s197 + $0x78] sm:$0xff]
        %v252 = vld [vmem:[%s197 + $0x80] sm:$0xff]
        %v253 = vld [vmem:[%s197 + $0x88] sm:$0xff]
        %v254 = vld [vmem:[%s197 + $0x90] sm:$0xff]
        %v255 = vld [vmem:[%s197 + $0x98] sm:$0xff]
        %v256 = vld [vmem:[%s197 + $0xa0] sm:$0xff]
        %v257 = vld [vmem:[%s197 + $0xa8] sm:$0xff]
        %v258 = vld [vmem:[%s197 + $0xb0] sm:$0xff]
        %v259 = vld [vmem:[%s197 + $0xb8] sm:$0xff]
        %v260 = vld [vmem:[%s197 + $0xc0] sm:$0xff]
        %v261 = vld [vmem:[%s197 + $0xc8] sm:$0xff]
        %v262 = vld [vmem:[%s197 + $0xd0] sm:$0xff]
        %v263 = vld [vmem:[%s197 + $0xd8] sm:$0xff]
        %v264 = vld [vmem:[%s197 + $0xe0] sm:$0xff]
        %v265 = vld [vmem:[%s197 + $0xe8] sm:$0xff]
        %v266 = vld [vmem:[%s197 + $0xf0] sm:$0xff]
        %v267 = vld [vmem:[%s197 + $0xf8] sm:$0xff]
        %268 = vmatprep.subr.mxu0 0.0
        %269 = vmatpush1.msra.mxu0 %v251
        %270 = vmatprep.subr.mxu0 0.0
        %271 = vmatpush1.msra.mxu0 %v250
        %272 = vmatprep.subr.mxu0 0.0
        %273 = vmatpush1.msra.mxu0 %v249
        %274 = vmatprep.subr.mxu0 0.0
        %275 = vmatpush1.msra.mxu0 %v248
        %276 = vmatprep.subr.mxu0 0.0
        %277 = vmatpush1.msra.mxu0 %v247
        %278 = vmatprep.subr.mxu0 0.0
        %279 = vmatpush1.msra.mxu0 %v246
        %280 = vmatprep.subr.mxu0 0.0
        %281 = vmatpush1.msra.mxu0 %v245
        %282 = vmatprep.subr.mxu0 0.0
        %283 = vmatpush1.msra.mxu0 %v244
        %284 = vmatprep.subr.mxu0 0.0
        %285 = vmatpush1.msra.mxu0 %v243
        %286 = vmatprep.subr.mxu0 0.0
        %287 = vmatpush1.msra.mxu0 %v242
        %288 = vmatprep.subr.mxu0 0.0
        %289 = vmatpush1.msra.mxu0 %v241
        %290 = vmatprep.subr.mxu0 0.0
        %291 = vmatpush1.msra.mxu0 %v240
        %292 = vmatprep.subr.mxu0 0.0
        %293 = vmatpush1.msra.mxu0 %v239
        %294 = vmatprep.subr.mxu0 0.0
        %295 = vmatpush1.msra.mxu0 %v238
        %296 = vmatprep.subr.mxu0 0.0
        %297 = vmatpush1.msra.mxu0 %v237
        %298 = vmatprep.subr.mxu0 0.0
        %299 = vmatpush1.msra.mxu0 %v236
        %300 = vmatprep.subr.mxu0 0.0
        %301 = vmatpush2.msra.mxu0 %v267
        %302 = vmatprep.subr.mxu0 0.0
        %303 = vmatpush2.msra.mxu0 %v266
        %304 = vmatprep.subr.mxu0 0.0
        %305 = vmatpush2.msra.mxu0 %v265
        %306 = vmatprep.subr.mxu0 0.0
        %307 = vmatpush2.msra.mxu0 %v264
        %308 = vmatprep.subr.mxu0 0.0
        %309 = vmatpush2.msra.mxu0 %v263
        %310 = vmatprep.subr.mxu0 0.0
        %311 = vmatpush2.msra.mxu0 %v262
        %312 = vmatprep.subr.mxu0 0.0
        %313 = vmatpush2.msra.mxu0 %v261
        %314 = vmatprep.subr.mxu0 0.0
        %315 = vmatpush2.msra.mxu0 %v260
        %316 = vmatprep.subr.mxu0 0.0
        %317 = vmatpush2.msra.mxu0 %v259
        %318 = vmatprep.subr.mxu0 0.0
        %319 = vmatpush2.msra.mxu0 %v258
        %320 = vmatprep.subr.mxu0 0.0
        %321 = vmatpush2.msra.mxu0 %v257
        %322 = vmatprep.subr.mxu0 0.0
        %323 = vmatpush2.msra.mxu0 %v256
        %324 = vmatprep.subr.mxu0 0.0
        %325 = vmatpush2.msra.mxu0 %v255
        %326 = vmatprep.subr.mxu0 0.0
        %327 = vmatpush2.msra.mxu0 %v254
        %328 = vmatprep.subr.mxu0 0.0
        %329 = vmatpush2.msra.mxu0 %v253
        %330 = vmatprep.subr.mxu0 0.0
        %331 = vmatpush2.msra.mxu0 %v252
        %332 = vmatprep.mubr.f32.mxu0 %v233
        %333 = vmatmul.mubr.f32.gmra.mxu0 %v232
        %v334 = vpop.f32.mrf.mxu0
        %v335 = vadd.f32 0.0, %v334
        %v336 = vpop.f32.mrf.mxu0
        %337 = vmatprep.mubr.f32.mxu0 %v235
        %338 = vmatmul.mubr.f32.gmra.mxu0 %v234
        %v339 = vpop.f32.mrf.mxu0
        %v340 = vadd.f32 0.0, %v339
        %v341 = vpop.f32.mrf.mxu0
        %342 = vdwg.mxu0
        %v343 = vadd.f32 %v227, %v335
        %v344 = vadd.f32 %v228, %v340
        %345 = vst [vmem:[#allocation2] sm:$0xff] %v343
        %346 = vst [vmem:[#allocation2 + $0x8] sm:$0xff] %v344
        // Predicated region
        $region45: #{tpu_custom_call.1} parent=31 // pred_check
          %p347 = pneg %p221
        $region46: #{tpu_custom_call.1} parent=31 // pred_check_branch
          %349 = sbr.rel (%p347) target = $region48
        $region47: #{tpu_custom_call.1} parent=31 // pred_region
          %v350 = vld [vmem:[#allocation2] sm:$0xff]
          %v351 = vld [vmem:[#allocation2 + $0x8] sm:$0xff]
          %v352 = vld [vmem:[%s2] sm:$0xff]
          %v353 = vld [vmem:[%s2 + $0x8] sm:$0xff]
          %355 = vset.pattern.permute.xlu0 0
          %356 = vperm.xlu0 %355, %v352
          %v357 = vpop.permute.xlu0 %356
          %360 = vset.pattern.permute.xlu0 0
          %361 = vperm.xlu0 %360, %v353
          %v362 = vpop.permute.xlu0 %361
          %v364 = vadd.f32 %v350, %v357
          %v365 = vadd.f32 %v351, %v362
          %366 = vst [vmem:[%s219] sm:$0xff] %v364
          %367 = vst [vmem:[%s219 + $0x8] sm:$0xff] %v365
        $region48: #{tpu_custom_call.1} parent=31 // pred_fallthru
          _
        %s368 = sand.u32 %s111, 1
        %s369 = scalar_lea.sflag [#allocation5], %s368
        %s370 = sand.u32 %s111, 1
        %s371 = smul.addr %s370, 16
        %s372 = scalar_lea.vmem [#allocation8], %s371
        // Predicated region
        $region49: #{tpu_custom_call.1} parent=31 // pred_check
          %p373 = pneg %p121
        $region50: #{tpu_custom_call.1} parent=31 // pred_check_branch
          %375 = sbr.rel (%p373) target = $region52
        $region51: #{tpu_custom_call.1} parent=31 // pred_region
          %s377 = ssub.s32 256, 256
          %378 = vsyncadd %s369, %s377
          %s379 = smul.addr %s25, 128
          %s380 = scalar_lea.hbm %s3, %s379
          %s381 = sshll.u32 %s372, 4
          %s382 = int_to_ptr.vmem [resolvable:$true] %s381
          %387 = dma.vmem_to_hbm [thread:$0]  %s382, 256, %s380, %s369, 128, 256, 8
        $region52: #{tpu_custom_call.1} parent=31 // pred_fallthru
          _
      $region32: #{tpu_custom_call.1} parent=5 // pred_fallthru
        _
      %p388 = scmp.le.s32.totalorder 2, %s16
      // Predicated region
      $region53: #{tpu_custom_call.1} parent=5 // pred_check
        %p389 = pneg %p388
      $region54: #{tpu_custom_call.1} parent=5 // pred_check_branch
        %391 = sbr.rel (%p389) target = $region56
      $region55: #{tpu_custom_call.1} parent=5 // pred_region
        %s392 = ssub.s32 %s16, 2
        // Predicated region
        $region57: #{tpu_custom_call.1} parent=55 // pred_check
          %p393 = pneg %p127
        $region58: #{tpu_custom_call.1} parent=55 // pred_check_branch
          %395 = sbr.rel (%p393) target = $region60
        $region59: #{tpu_custom_call.1} parent=55 // pred_region
          %s396 = sand.u32 %s112, 1
          %s397 = scalar_lea.sflag [#allocation5], %s396
          %s398 = sand.u32 %s112, 1
          %s399 = smul.addr %s398, 16
          %s400 = scalar_lea.vmem [#allocation8], %s399
          %401 = dma.done %s397, 256
        $region60: #{tpu_custom_call.1} parent=55 // pred_fallthru
          _
      $region56: #{tpu_custom_call.1} parent=5 // pred_fallthru
        _
    $region6: #{tpu_custom_call.1} parent=1 // loop_footer
      %s20 = sadd.s32 1, %s16
    $region7: #{tpu_custom_call.1} parent=1 // loop_footer_branch
      %15 = sbr.rel target = $region3
    $region8: #{tpu_custom_call.1} parent=1 // loop_exit
      _
    %402 = vsyncpa [#allocation4], 1
    %s403 = scalar_lea.sflag [#allocation4], 1
    %404 = vsyncpa %s403, 1
    %405 = vsyncpa [#allocation7], 1
    %s406 = scalar_lea.sflag [#allocation7], 1
    %407 = vsyncpa %s406, 1
    %408 = vsyncpa [#allocation5], 1
    %s409 = scalar_lea.sflag [#allocation5], 1
    %410 = vsyncpa %s409, 1

</llo_original>
